<compile_context>
chip_gen: v7x
topology: tpu7x:2x2x1
jax: 0.10.0
libtpu: 0.0.40
codegen_flags: <defaults>
</compile_context>

<pallas_src>
import jax
import jax.numpy as jnp
from jax.experimental import pallas as pl
from jax.experimental.pallas import tpu as pltpu


def _make_concat_dma_kernel(axis, offsets, sizes, ndim):
    """Builds a kernel body issuing one HBM->HBM DMA per input."""
    n_in = len(sizes)

    def kernel(*refs):
        # refs = (*in_hbm_refs, out_hbm_ref, dma_sems)
        in_refs = refs[:n_in]
        out_ref = refs[n_in]
        sems = refs[n_in + 1]

        copies = []
        for i in range(n_in):
            off, sz = offsets[i], sizes[i]
            # Static slice of the output along the concat axis (major dim,
            # so this is a simple strided rectangle for the DMA engine).
            idx = tuple(
                slice(off, off + sz) if d == axis else slice(None)
                for d in range(ndim)
            )
            cp = pltpu.make_async_copy(in_refs[i], out_ref.at[idx], sems.at[i])
            cp.start()  # issue all DMAs first so they overlap
            copies.append(cp)

        for cp in copies:
            cp.wait()

    return kernel


def concat_pallas(xs, dim=1):
    """Concatenate a list of arrays along `dim` with a single Pallas call."""
    xs = list(xs)
    assert len(xs) >= 1
    ndim = xs[0].ndim
    dtype = xs[0].dtype
    axis = dim if dim >= 0 else dim + ndim
    assert 0 <= axis < ndim

    # TODO(synk): concat along one of the last two (sublane/lane) dims would
    # need tile-aligned slices or a VMEM-staged kernel; only major-dim concat
    # (e.g. NCHW channels, dim=1) is lowered to the direct-DMA kernel here.
    assert axis < ndim - 2, (
        "Pallas concat kernel supports major-dim concat only "
        f"(got axis={axis} for ndim={ndim})")

    base_shape = list(xs[0].shape)
    for x in xs:
        assert x.ndim == ndim and x.dtype == dtype
        for d in range(ndim):
            if d != axis:
                assert x.shape[d] == base_shape[d]

    sizes = tuple(int(x.shape[axis]) for x in xs)
    offsets = []
    acc = 0
    for s in sizes:
        offsets.append(acc)
        acc += s
    offsets = tuple(offsets)

    out_shape = list(base_shape)
    out_shape[axis] = acc
    out_shape = tuple(out_shape)

    kernel = _make_concat_dma_kernel(axis, offsets, sizes, ndim)

    # Pure-bandwidth op: read every input byte once, write it once.
    total_bytes = sum(x.size * x.dtype.itemsize for x in xs)
    cost = pl.CostEstimate(
        flops=0, transcendentals=0, bytes_accessed=2 * total_bytes)

    out = pl.pallas_call(
        kernel,
        out_shape=jax.ShapeDtypeStruct(out_shape, dtype),
        in_specs=[pl.BlockSpec(memory_space=pl.ANY) for _ in xs],
        out_specs=pl.BlockSpec(memory_space=pl.ANY),
        scratch_shapes=[pltpu.SemaphoreType.DMA((len(xs),))],
        compiler_params=pltpu.CompilerParams(has_side_effects=True),
        cost_estimate=cost,
    )(*xs)

    return out


class Concat:
    """JAX/Pallas equivalent of the PyTorch Concat module."""

    def __init__(self, dimension=1):
        self.d = dimension

    def __call__(self, x):
        return concat_pallas(list(x), dim=self.d)


if __name__ == "__main__":
    key = jax.random.PRNGKey(0)
    k1, k2, k3 = jax.random.split(key, 3)

    # Small NCHW inputs with differing channel counts (typical YOLO concat).
    a = jax.random.normal(k1, (2, 4, 16, 16), dtype=jnp.float32)
    b = jax.random.normal(k2, (2, 8, 16, 16), dtype=jnp.float32)
    c = jax.random.normal(k3, (2, 4, 16, 16), dtype=jnp.float32)

    module = Concat(dimension=1)
    out = module([a, b, c])
    out = jax.block_until_ready(out)

    # Verify against plain JAX concatenate.
    ref = jnp.concatenate([a, b, c], axis=1)
    assert out.shape == ref.shape == (2, 16, 16, 16)
    assert jnp.array_equal(out, ref)

    print("KERNEL_OK")
</pallas_src>

<mosaic_0001>
module attributes {stable_mosaic.version = 11 : i64} {
  func.func @kernel(%arg0: memref<2x4x16x16xf32, #tpu.memory_space<any>>, %arg1: memref<2x8x16x16xf32, #tpu.memory_space<any>>, %arg2: memref<2x4x16x16xf32, #tpu.memory_space<any>>, %arg3: memref<2x16x16x16xf32, #tpu.memory_space<any>>, %arg4: memref<3x!tpu.dma_semaphore, #tpu.memory_space<semaphore_mem>>) attributes {dimension_semantics = [], scalar_prefetch = 0 : i64, scratch_operands = 1 : i64, tpu.core_type = #tpu.core_type<tc>} {
    %c0_i32 = arith.constant 0 : i32
    %c0_i32_0 = arith.constant 0 : i32
    %c0_i32_1 = arith.constant 0 : i32
    %c0_i32_2 = arith.constant 0 : i32
    %c0_i32_3 = arith.constant 0 : i32
    %0 = tpu.memref_slice %arg3[%c0_i32_0, %c0_i32_1, %c0_i32_2, %c0_i32_3] : memref<2x16x16x16xf32, #tpu.memory_space<any>> -> memref<2x4x16x16xf32, #tpu.memory_space<any>>
    %1 = tpu.memref_slice %arg4[%c0_i32] : memref<3x!tpu.dma_semaphore, #tpu.memory_space<semaphore_mem>> -> memref<1x!tpu.dma_semaphore, #tpu.memory_space<semaphore_mem>>
    %2 = tpu.memref_squeeze %1 : memref<1x!tpu.dma_semaphore, #tpu.memory_space<semaphore_mem>> -> memref<!tpu.dma_semaphore, #tpu.memory_space<semaphore_mem>>
    tpu.enqueue_dma source(%arg0 : memref<2x4x16x16xf32, #tpu.memory_space<any>>) target(%0 : memref<2x4x16x16xf32, #tpu.memory_space<any>>) target_semaphore(%2 : memref<!tpu.dma_semaphore, #tpu.memory_space<semaphore_mem>>)
    %c1_i32 = arith.constant 1 : i32
    %c0_i32_4 = arith.constant 0 : i32
    %c4_i32 = arith.constant 4 : i32
    %c0_i32_5 = arith.constant 0 : i32
    %c0_i32_6 = arith.constant 0 : i32
    %3 = tpu.memref_slice %arg3[%c0_i32_4, %c4_i32, %c0_i32_5, %c0_i32_6] : memref<2x16x16x16xf32, #tpu.memory_space<any>> -> memref<2x8x16x16xf32, #tpu.memory_space<any>>
    %4 = tpu.memref_slice %arg4[%c1_i32] : memref<3x!tpu.dma_semaphore, #tpu.memory_space<semaphore_mem>> -> memref<1x!tpu.dma_semaphore, #tpu.memory_space<semaphore_mem>>
    %5 = tpu.memref_squeeze %4 : memref<1x!tpu.dma_semaphore, #tpu.memory_space<semaphore_mem>> -> memref<!tpu.dma_semaphore, #tpu.memory_space<semaphore_mem>>
    tpu.enqueue_dma source(%arg1 : memref<2x8x16x16xf32, #tpu.memory_space<any>>) target(%3 : memref<2x8x16x16xf32, #tpu.memory_space<any>>) target_semaphore(%5 : memref<!tpu.dma_semaphore, #tpu.memory_space<semaphore_mem>>)
    %c2_i32 = arith.constant 2 : i32
    %c0_i32_7 = arith.constant 0 : i32
    %c12_i32 = arith.constant 12 : i32
    %c0_i32_8 = arith.constant 0 : i32
    %c0_i32_9 = arith.constant 0 : i32
    %6 = tpu.memref_slice %arg3[%c0_i32_7, %c12_i32, %c0_i32_8, %c0_i32_9] : memref<2x16x16x16xf32, #tpu.memory_space<any>> -> memref<2x4x16x16xf32, #tpu.memory_space<any>>
    %7 = tpu.memref_slice %arg4[%c2_i32] : memref<3x!tpu.dma_semaphore, #tpu.memory_space<semaphore_mem>> -> memref<1x!tpu.dma_semaphore, #tpu.memory_space<semaphore_mem>>
    %8 = tpu.memref_squeeze %7 : memref<1x!tpu.dma_semaphore, #tpu.memory_space<semaphore_mem>> -> memref<!tpu.dma_semaphore, #tpu.memory_space<semaphore_mem>>
    tpu.enqueue_dma source(%arg2 : memref<2x4x16x16xf32, #tpu.memory_space<any>>) target(%6 : memref<2x4x16x16xf32, #tpu.memory_space<any>>) target_semaphore(%8 : memref<!tpu.dma_semaphore, #tpu.memory_space<semaphore_mem>>)
    %c0_i32_10 = arith.constant 0 : i32
    %c0_i32_11 = arith.constant 0 : i32
    %c0_i32_12 = arith.constant 0 : i32
    %c0_i32_13 = arith.constant 0 : i32
    %c0_i32_14 = arith.constant 0 : i32
    %9 = tpu.memref_slice %arg3[%c0_i32_11, %c0_i32_12, %c0_i32_13, %c0_i32_14] : memref<2x16x16x16xf32, #tpu.memory_space<any>> -> memref<2x4x16x16xf32, #tpu.memory_space<any>>
    %10 = tpu.memref_slice %arg4[%c0_i32_10] : memref<3x!tpu.dma_semaphore, #tpu.memory_space<semaphore_mem>> -> memref<1x!tpu.dma_semaphore, #tpu.memory_space<semaphore_mem>>
    %11 = tpu.memref_squeeze %10 : memref<1x!tpu.dma_semaphore, #tpu.memory_space<semaphore_mem>> -> memref<!tpu.dma_semaphore, #tpu.memory_space<semaphore_mem>>
    tpu.wait_dma2 semaphore(%11 : memref<!tpu.dma_semaphore, #tpu.memory_space<semaphore_mem>>) src(%arg0 : memref<2x4x16x16xf32, #tpu.memory_space<any>>) dst(%9 : memref<2x4x16x16xf32, #tpu.memory_space<any>>)
    %c1_i32_15 = arith.constant 1 : i32
    %c0_i32_16 = arith.constant 0 : i32
    %c4_i32_17 = arith.constant 4 : i32
    %c0_i32_18 = arith.constant 0 : i32
    %c0_i32_19 = arith.constant 0 : i32
    %12 = tpu.memref_slice %arg3[%c0_i32_16, %c4_i32_17, %c0_i32_18, %c0_i32_19] : memref<2x16x16x16xf32, #tpu.memory_space<any>> -> memref<2x8x16x16xf32, #tpu.memory_space<any>>
    %13 = tpu.memref_slice %arg4[%c1_i32_15] : memref<3x!tpu.dma_semaphore, #tpu.memory_space<semaphore_mem>> -> memref<1x!tpu.dma_semaphore, #tpu.memory_space<semaphore_mem>>
    %14 = tpu.memref_squeeze %13 : memref<1x!tpu.dma_semaphore, #tpu.memory_space<semaphore_mem>> -> memref<!tpu.dma_semaphore, #tpu.memory_space<semaphore_mem>>
    tpu.wait_dma2 semaphore(%14 : memref<!tpu.dma_semaphore, #tpu.memory_space<semaphore_mem>>) src(%arg1 : memref<2x8x16x16xf32, #tpu.memory_space<any>>) dst(%12 : memref<2x8x16x16xf32, #tpu.memory_space<any>>)
    %c2_i32_20 = arith.constant 2 : i32
    %c0_i32_21 = arith.constant 0 : i32
    %c12_i32_22 = arith.constant 12 : i32
    %c0_i32_23 = arith.constant 0 : i32
    %c0_i32_24 = arith.constant 0 : i32
    %15 = tpu.memref_slice %arg3[%c0_i32_21, %c12_i32_22, %c0_i32_23, %c0_i32_24] : memref<2x16x16x16xf32, #tpu.memory_space<any>> -> memref<2x4x16x16xf32, #tpu.memory_space<any>>
    %16 = tpu.memref_slice %arg4[%c2_i32_20] : memref<3x!tpu.dma_semaphore, #tpu.memory_space<semaphore_mem>> -> memref<1x!tpu.dma_semaphore, #tpu.memory_space<semaphore_mem>>
    %17 = tpu.memref_squeeze %16 : memref<1x!tpu.dma_semaphore, #tpu.memory_space<semaphore_mem>> -> memref<!tpu.dma_semaphore, #tpu.memory_space<semaphore_mem>>
    tpu.wait_dma2 semaphore(%17 : memref<!tpu.dma_semaphore, #tpu.memory_space<semaphore_mem>>) src(%arg2 : memref<2x4x16x16xf32, #tpu.memory_space<any>>) dst(%15 : memref<2x4x16x16xf32, #tpu.memory_space<any>>)
    return
  }
}

</mosaic_0001>

<llo_original>
// kernel: tpu_custom_call.1
$region0: #{tpu_custom_call.1}
  #allocation0 [shape = 'u32[]', space=smem, size = 0x4, offset = 0x4, fixed_abs, tag = 'smem constant byte address 0x4 - core index']
  #allocation1 [shape = 'u32[144,128]{1,0:T(1,128)}', space=vmem, size = 0x12000, scoped, tag = 'internal scratch']
  #allocation2 [shape = 's32[3]{0}', space=sflag, size = 0xc, scoped, tag = 'scratch operand']
  #allocation3 [shape = 's32[]', space=sflag, size = 0x4, offset = 0, fixed_abs, tag = 'sflag constant byte address 0x0 - dummy sync flag']
  #allocation5 [shape = 's32[]', space=sflag, size = 0x4, offset = 0, fixed_abs, tag = 'sflag constant byte address 0x0 - dummy sync flag']
  #allocation7 [shape = 's32[]', space=sflag, size = 0x4, offset = 0, fixed_abs, tag = 'sflag constant byte address 0x0 - dummy sync flag']
  %s0 = inlined_call_operand.hbm [shape: f32[2,4,16,16], index: 0, kind: input, shape index: {}]
  %s1 = inlined_call_operand.hbm [shape: f32[2,8,16,16], index: 1, kind: input, shape index: {}]
  %s2 = inlined_call_operand.hbm [shape: f32[2,4,16,16], index: 2, kind: input, shape index: {}]
  %s3 = inlined_call_operand.hbm [shape: f32[2,16,16,16], index: 3, kind: output, shape index: {}]
  %s4 = sld [smem:[#allocation0]]
  $region2: #{tpu_custom_call.1} parent=0
    _
  %s6 = ssub.s32 1, %s4
  %s7 = scalar_select 0, %s6, %s4
  $region1: #{tpu_custom_call.1} parent=0
    #allocation4 [shape = 'u32[3]{0}', space=smem, size = 0xc, scoped, tag = 'DMA stride descriptor']
    #allocation6 [shape = 'u32[3]{0}', space=smem, size = 0xc, scoped, tag = 'DMA stride descriptor']
    #allocation8 [shape = 'u32[3]{0}', space=smem, size = 0xc, scoped, tag = 'DMA stride descriptor']
    %s9 = sshll.u32 1, 14
    %s10 = sxor.u32 4294967295, %s9
    %s13 = sshll.u32 3, 24
    %s14 = sxor.u32 4294967295, %s13
    %s15 = sand.u32 0, %s14
    %s17 = sor.u32 %s15, 0
    %20 = sst [smem:[#allocation4]] 1024
    %s21 = scalar_lea.smem [#allocation4], 1
    %22 = sst [smem:[%s21]] 4096
    %s23 = scalar_lea.smem [#allocation4], 2
    %24 = sst [smem:[%s23]] 64
    %26 = dma.general %s0, 2048, %s3, [#allocation2], [#allocation3], [#allocation4], %s17, 0
    %s27 = scalar_lea.hbm %s3, 1024
    %s28 = scalar_lea.sflag [#allocation2], 1
    %s30 = sshll.u32 1, 14
    %s31 = sxor.u32 4294967295, %s30
    %s34 = sshll.u32 3, 24
    %s35 = sxor.u32 4294967295, %s34
    %s36 = sand.u32 0, %s35
    %s38 = sor.u32 %s36, 0
    %41 = sst [smem:[#allocation6]] 2048
    %s42 = scalar_lea.smem [#allocation6], 1
    %43 = sst [smem:[%s42]] 4096
    %s44 = scalar_lea.smem [#allocation6], 2
    %45 = sst [smem:[%s44]] 128
    %47 = dma.general %s1, 4096, %s27, %s28, [#allocation5], [#allocation6], %s38, 0
    %s48 = scalar_lea.hbm %s3, 3072
    %s49 = scalar_lea.sflag [#allocation2], 2
    %s51 = sshll.u32 1, 14
    %s52 = sxor.u32 4294967295, %s51
    %s55 = sshll.u32 3, 24
    %s56 = sxor.u32 4294967295, %s55
    %s57 = sand.u32 0, %s56
    %s59 = sor.u32 %s57, 0
    %62 = sst [smem:[#allocation8]] 1024
    %s63 = scalar_lea.smem [#allocation8], 1
    %64 = sst [smem:[%s63]] 4096
    %s65 = scalar_lea.smem [#allocation8], 2
    %66 = sst [smem:[%s65]] 64
    %68 = dma.general %s2, 2048, %s48, %s49, [#allocation7], [#allocation8], %s59, 0
    %s69 = smul.u32 2, 4
    %s70 = smul.u32 %s69, 16
    %s71 = smul.u32 %s70, 1
    %s72 = sshll.u32 %s71, 4
    %73 = dma.done [#allocation2], %s72
    %s74 = smul.u32 2, 8
    %s75 = smul.u32 %s74, 16
    %s76 = smul.u32 %s75, 1
    %s77 = sshll.u32 %s76, 4
    %78 = dma.done %s28, %s77
    %s79 = sshll.u32 %s71, 4
    %80 = dma.done %s49, %s79
  %81 = vsyncmov [#allocation2]
  %s82 = vpop.sfrf %81
  %p83 = scmp.eq.s32.totalorder %s82, 0
  %p84 = pneg %p83
  %86 = shalt.err (%p84)
  %s87 = scalar_lea.sflag [#allocation2], 1
  %88 = vsyncmov %s87
  %s89 = vpop.sfrf %88
  %p90 = scmp.eq.s32.totalorder %s89, 0
  %p91 = pneg %p90
  %93 = shalt.err (%p91)
  %s94 = scalar_lea.sflag [#allocation2], 2
  %95 = vsyncmov %s94
  %s96 = vpop.sfrf %95
  %p97 = scmp.eq.s32.totalorder %s96, 0
  %p98 = pneg %p97
  %100 = shalt.err (%p98)

</llo_original>
